<compile_context>
chip_gen: v7x
topology: tpu7x:2x2x1
jax: 0.10.0
libtpu: 0.0.40
codegen_flags: <defaults>
</compile_context>

<pallas_src>
import jax
import jax.numpy as jnp
from jax.experimental import pallas as pl
from jax.experimental.pallas import tpu as pltpu


def mlp_kernel(x_ref, w1_ref, b1_ref, w2_ref, b2_ref, o_ref):
    # linear1 + ReLU on the MXU (f32 accumulation).
    h = jnp.dot(x_ref[...], w1_ref[...], preferred_element_type=jnp.float32)
    h = jnp.maximum(h + b1_ref[...], 0.0)                              # (tm, Hp) f32
    # linear2: canonical (tm,Hp)@(Hp,1) matmul -- w2 column is latched, h streams
    # untransposed (no XLU transpose of h, no repeated weight latches).
    z = jnp.dot(h, w2_ref[...], preferred_element_type=jnp.float32)    # (tm, 1)
    o_ref[...] = jax.nn.sigmoid(z + b2_ref[0, 0]).astype(o_ref.dtype)  # scalar b2 from SMEM


def _round_up(n, m):
    return ((n + m - 1) // m) * m


def _pick_batch_tile(B, block_rows):
    """Batch tile: large (amortize grid-step overhead) but >= 2 grid steps when
    the batch is big enough, so v7x's two TensorCores both get work."""
    tm = min(block_rows, _round_up(B, 8))          # sublane granularity
    if B > 256:
        tm = min(tm, _round_up(pl.cdiv(B, 2), 128))
    return max(_round_up(tm, 8), 8)


def neural_net_forward(x, w1, b1, w2, b2, *, block_rows=8192):
    """Fused MLP forward: sigmoid(relu(x @ w1 + b1) @ w2 + b2) -> [B, 1].

    x:  [B, input_size] (f32 or bf16 -- used as-is, no wrapper cast)
    w1: [input_size, H]   b1: [1, H]     (nn.Linear weights pre-transposed)
    w2: [H, 1]            b2: [1, 1]
    """
    B, D = x.shape
    H = w1.shape[1]

    # Zero-pad the hidden dim to a lane multiple (exact result; tiny arrays).
    Hp = max(128, _round_up(H, 128))
    if Hp != H:
        w1 = jnp.pad(w1, ((0, 0), (0, Hp - H)))
        b1 = jnp.pad(b1, ((0, 0), (0, Hp - H)))
        w2 = jnp.pad(w2, ((0, Hp - H), (0, 0)))
    if w1.dtype != x.dtype:
        w1 = w1.astype(x.dtype)          # tiny; lets bf16 x use the bf16 MXU path
    b1 = b1.astype(jnp.float32)
    w2 = w2.astype(jnp.float32)
    b2 = b2.astype(jnp.float32)

    tm = _pick_batch_tile(B, block_rows)
    grid = (pl.cdiv(B, tm),)             # ragged final tile handled by Pallas

    # VMEM budget from actual buffer sizes: double-buffered x/out blocks (last
    # dim lane-pads to 128), resident weights, the (tm,Hp) f32 intermediate,
    # plus headroom for compiler scratch.  Clamp to [32, 48] MiB (safe on v7x's
    # 64 MiB physical VMEM; raises the default scoped limit on v5e).
    lane = 128
    itemsize = jnp.dtype(x.dtype).itemsize
    x_buf = tm * lane * itemsize
    out_buf = tm * lane * 4
    w_bufs = (_round_up(D, 8) * Hp * itemsize) + (8 * Hp * 4) + (Hp * lane * 4)
    vmem_bytes = 2 * (x_buf + out_buf + w_bufs) + tm * Hp * 4 + (8 << 20)
    vmem_bytes = int(min(max(vmem_bytes, 32 << 20), 48 << 20))

    return pl.pallas_call(
        mlp_kernel,
        out_shape=jax.ShapeDtypeStruct((B, 1), jnp.float32),
        grid=grid,
        in_specs=[
            pl.BlockSpec((tm, D), lambda i: (i, 0)),            # x: tiled over batch
            pl.BlockSpec((D, Hp), lambda i: (0, 0)),            # w1: VMEM-resident
            pl.BlockSpec((1, Hp), lambda i: (0, 0)),            # b1: VMEM-resident
            pl.BlockSpec((Hp, 1), lambda i: (0, 0)),            # w2: VMEM-resident
            pl.BlockSpec(memory_space=pltpu.MemorySpace.SMEM),  # b2 scalar in SMEM
        ],
        out_specs=pl.BlockSpec((tm, 1), lambda i: (i, 0)),      # (B,1) written directly
        compiler_params=pltpu.CompilerParams(
            dimension_semantics=("parallel",),                  # shard batch across TCs (v7x)
            vmem_limit_bytes=vmem_bytes,
        ),
    )(x, w1, b1, w2, b2)


def init_params(key, input_size, hidden_size):
    """Deterministic init mimicking nn.Linear's U(-1/sqrt(fan_in), 1/sqrt(fan_in))."""
    k1, k2, k3, k4 = jax.random.split(key, 4)
    s1 = 1.0 / jnp.sqrt(input_size)
    s2 = 1.0 / jnp.sqrt(hidden_size)
    # stored already transposed to [in, out] for the kernel
    w1 = jax.random.uniform(k1, (input_size, hidden_size), jnp.float32, -s1, s1)
    b1 = jax.random.uniform(k2, (1, hidden_size), jnp.float32, -s1, s1)
    w2 = jax.random.uniform(k3, (hidden_size, 1), jnp.float32, -s2, s2)
    b2 = jax.random.uniform(k4, (1, 1), jnp.float32, -s2, s2)
    return w1, b1, w2, b2


def _reference(x, w1, b1, w2, b2):
    return jax.nn.sigmoid(jnp.maximum(x @ w1 + b1, 0.0) @ w2 + b2)


if __name__ == "__main__":
    input_size, hidden_size = 32, 32
    key = jax.random.PRNGKey(0)
    kx, kp, kx2 = jax.random.split(key, 3)
    w1, b1, w2, b2 = init_params(kp, input_size, hidden_size)

    # Small batch: single exact tile (tm = 8).
    x = jax.random.normal(kx, (8, input_size), jnp.float32)
    out = neural_net_forward(x, w1, b1, w2, b2)
    jax.block_until_ready(out)
    ref = _reference(x, w1, b1, w2, b2)
    assert out.shape == (8, 1)
    assert jnp.allclose(out, ref, atol=1e-5, rtol=1e-5)

    # Larger, non-multiple batch: 2-step grid (tm = 384) with a ragged final
    # tile -- exercises the no-pad read/write masking path.
    x2 = jax.random.normal(kx2, (600, input_size), jnp.float32)
    out2 = neural_net_forward(x2, w1, b1, w2, b2)
    jax.block_until_ready(out2)
    ref2 = _reference(x2, w1, b1, w2, b2)
    assert out2.shape == (600, 1)
    assert jnp.allclose(out2, ref2, atol=1e-5, rtol=1e-5)

    print("KERNEL_OK")
</pallas_src>

<mosaic_0001>
module attributes {stable_mosaic.version = 11 : i64} {
  func.func @mlp_kernel(%arg0: i32, %arg1: memref<8x32xf32, #tpu.memory_space<vmem>>, %arg2: memref<32x128xf32, #tpu.memory_space<vmem>>, %arg3: memref<1x128xf32, #tpu.memory_space<vmem>>, %arg4: memref<128x1xf32, #tpu.memory_space<vmem>>, %arg5: memref<1x1xf32, #tpu.memory_space<smem>>, %arg6: memref<8x1xf32, #tpu.memory_space<vmem>>) attributes {dimension_semantics = [#tpu.dimension_semantics<parallel>], iteration_bounds = array<i64: 1>, scalar_prefetch = 0 : i64, scratch_operands = 0 : i64, tpu.core_type = #tpu.core_type<tc>, window_params = [{transform_indices = @transform_0, window_bounds = array<i64: 8, 32>}, {pipeline_mode = #tpu.pipeline_mode<synchronous>, transform_indices = @transform_1, window_bounds = array<i64: 32, 128>}, {pipeline_mode = #tpu.pipeline_mode<synchronous>, transform_indices = @transform_2, window_bounds = array<i64: 1, 128>}, {pipeline_mode = #tpu.pipeline_mode<synchronous>, transform_indices = @transform_3, window_bounds = array<i64: 128, 1>}, {transform_indices = @transform_4, window_bounds = array<i64: 1, 1>}, {transform_indices = @transform_5, window_bounds = array<i64: 8, 1>}]} {
    %c0 = arith.constant 0 : index
    %c0_0 = arith.constant 0 : index
    %0 = vector.load %arg1[%c0, %c0_0] : memref<8x32xf32, #tpu.memory_space<vmem>>, vector<8x32xf32>
    %c0_1 = arith.constant 0 : index
    %c0_2 = arith.constant 0 : index
    %1 = vector.load %arg2[%c0_1, %c0_2] : memref<32x128xf32, #tpu.memory_space<vmem>>, vector<32x128xf32>
    %cst = arith.constant dense<0.000000e+00> : vector<8x128xf32>
    %2 = tpu.matmul %0, %1, %cst {dimension_numbers = #tpu.dot_dimension_numbers<[1], [0], [0], [1], [0, 0, 1, 1], [], []>} : vector<8x32xf32>, vector<32x128xf32>, vector<8x128xf32> -> vector<8x128xf32>
    %c0_3 = arith.constant 0 : index
    %c0_4 = arith.constant 0 : index
    %3 = vector.load %arg3[%c0_3, %c0_4] : memref<1x128xf32, #tpu.memory_space<vmem>>, vector<1x128xf32>
    %4 = vector.broadcast %3 : vector<1x128xf32> to vector<8x128xf32>
    %5 = arith.addf %2, %4 : vector<8x128xf32>
    %cst_5 = arith.constant 0.000000e+00 : f32
    %6 = vector.broadcast %cst_5 : f32 to vector<8x128xf32>
    %7 = arith.maximumf %5, %6 : vector<8x128xf32>
    %c0_6 = arith.constant 0 : index
    %c0_7 = arith.constant 0 : index
    %8 = vector.load %arg4[%c0_6, %c0_7] : memref<128x1xf32, #tpu.memory_space<vmem>>, vector<128x1xf32>
    %cst_8 = arith.constant dense<0.000000e+00> : vector<8x1xf32>
    %9 = tpu.matmul %7, %8, %cst_8 {dimension_numbers = #tpu.dot_dimension_numbers<[1], [0], [0], [1], [0, 0, 1, 1], [], []>} : vector<8x128xf32>, vector<128x1xf32>, vector<8x1xf32> -> vector<8x1xf32>
    %c0_9 = arith.constant 0 : index
    %c0_10 = arith.constant 0 : index
    %10 = memref.load %arg5[%c0_9, %c0_10] : memref<1x1xf32, #tpu.memory_space<smem>>
    %11 = vector.broadcast %10 : f32 to vector<8x1xf32>
    %12 = arith.addf %9, %11 : vector<8x1xf32>
    %13 = arith.negf %12 : vector<8x1xf32>
    %14 = math.exp %13 : vector<8x1xf32>
    %cst_11 = arith.constant 1.000000e+00 : f32
    %15 = vector.broadcast %cst_11 : f32 to vector<8x1xf32>
    %16 = arith.addf %15, %14 : vector<8x1xf32>
    %17 = arith.divf %15, %16 : vector<8x1xf32>
    %c0_12 = arith.constant 0 : index
    %c0_13 = arith.constant 0 : index
    %18 = vector.load %arg6[%c0_12, %c0_13] : memref<8x1xf32, #tpu.memory_space<vmem>>, vector<8x1xf32>
    tpu.vector_store %arg6[%c0_12, %c0_13], %17 {strides = array<i32>} : memref<8x1xf32, #tpu.memory_space<vmem>>, vector<8x1xf32>,
    return
  }
  func.func @transform_0(%arg0: i32) -> (i32, i32) {
    %c0_i32 = arith.constant 0 : i32
    %c0_i32_0 = arith.constant 0 : i32
    return %arg0, %c0_i32 : i32, i32
  }
  func.func @transform_1(%arg0: i32) -> (i32, i32) {
    %c0_i32 = arith.constant 0 : i32
    %c0_i32_0 = arith.constant 0 : i32
    %c0_i32_1 = arith.constant 0 : i32
    return %c0_i32, %c0_i32_0 : i32, i32
  }
  func.func @transform_2(%arg0: i32) -> (i32, i32) {
    %c0_i32 = arith.constant 0 : i32
    %c0_i32_0 = arith.constant 0 : i32
    %c0_i32_1 = arith.constant 0 : i32
    return %c0_i32, %c0_i32_0 : i32, i32
  }
  func.func @transform_3(%arg0: i32) -> (i32, i32) {
    %c0_i32 = arith.constant 0 : i32
    %c0_i32_0 = arith.constant 0 : i32
    %c0_i32_1 = arith.constant 0 : i32
    return %c0_i32, %c0_i32_0 : i32, i32
  }
  func.func @transform_4(%arg0: i32) -> (i32, i32) {
    %c0_i32 = arith.constant 0 : i32
    %c0_i32_0 = arith.constant 0 : i32
    %c0_i32_1 = arith.constant 0 : i32
    return %c0_i32, %c0_i32_0 : i32, i32
  }
  func.func @transform_5(%arg0: i32) -> (i32, i32) {
    %c0_i32 = arith.constant 0 : i32
    %c0_i32_0 = arith.constant 0 : i32
    return %arg0, %c0_i32 : i32, i32
  }
}

</mosaic_0001>

<llo_original>
// kernel: tpu_custom_call.1
$region0: #{tpu_custom_call.1}
  #allocation0 [shape = 'u32[]', space=smem, size = 0x4, offset = 0x4, fixed_abs, tag = 'smem constant byte address 0x4 - core index']
  #allocation1 [shape = 'u32[144,128]{1,0:T(1,128)}', space=vmem, size = 0x12000, scoped, tag = 'internal scratch']
  #allocation2 [shape = 'f32[1,1]{1,0:T(1,128)S(6)}', space=smem, size = 0x200, scoped, tag = 'scoped memory for tpu_custom_call.1']
  %s0 = inlined_call_operand.vmem [shape: f32[8,32], index: 0, kind: input, shape index: {}]
  %s1 = inlined_call_operand.vmem [shape: f32[32,128], index: 1, kind: input, shape index: {}]
  %s2 = inlined_call_operand.vmem [shape: f32[1,128], index: 2, kind: input, shape index: {}]
  %s3 = inlined_call_operand.vmem [shape: f32[128,1], index: 3, kind: input, shape index: {}]
  %s4 = inlined_call_operand.<no memory space> [shape: f32[1,1], index: 4, kind: input, shape index: {}]
  %s5 = inlined_call_operand.vmem [shape: f32[8,1], index: 5, kind: output, shape index: {}]
  %s6 = sld [smem:[#allocation0]]
  $region30: #{tpu_custom_call.1} parent=0
    _
  %s8 = ssub.s32 1, %s6
  %s9 = scalar_select 0, %s8, %s6
  %10 = sst [smem:[#allocation2]] %s4
  // Predicated region
  $region2: #{tpu_custom_call.1} parent=0 // pred_check
    _
  $region3: #{tpu_custom_call.1} parent=0 // pred_check_branch
    %12 = sbr.rel (0) target = $region5
  $region4: #{tpu_custom_call.1} parent=0 // pred_region
    _
  $region5: #{tpu_custom_call.1} parent=0 // pred_fallthru
    _
  // Predicated region
  $region6: #{tpu_custom_call.1} parent=0 // pred_check
    _
  $region7: #{tpu_custom_call.1} parent=0 // pred_check_branch
    %14 = sbr.rel (0) target = $region9
  $region8: #{tpu_custom_call.1} parent=0 // pred_region
    _
  $region9: #{tpu_custom_call.1} parent=0 // pred_fallthru
    _
  // Predicated region
  $region10: #{tpu_custom_call.1} parent=0 // pred_check
    _
  $region11: #{tpu_custom_call.1} parent=0 // pred_check_branch
    %16 = sbr.rel (0) target = $region13
  $region12: #{tpu_custom_call.1} parent=0 // pred_region
    _
  $region13: #{tpu_custom_call.1} parent=0 // pred_fallthru
    _
  // Predicated region
  $region14: #{tpu_custom_call.1} parent=0 // pred_check
    _
  $region15: #{tpu_custom_call.1} parent=0 // pred_check_branch
    %18 = sbr.rel (0) target = $region17
  $region16: #{tpu_custom_call.1} parent=0 // pred_region
    _
  $region17: #{tpu_custom_call.1} parent=0 // pred_fallthru
    _
  // Predicated region
  $region18: #{tpu_custom_call.1} parent=0 // pred_check
    _
  $region19: #{tpu_custom_call.1} parent=0 // pred_check_branch
    %20 = sbr.rel (0) target = $region21
  $region20: #{tpu_custom_call.1} parent=0 // pred_region
    _
  $region21: #{tpu_custom_call.1} parent=0 // pred_fallthru
    _
  %v21 = vld [vmem:[%s0] sm:$0xff]
  %v22 = vld [vmem:[%s1] sm:$0xff]
  %v23 = vld [vmem:[%s1 + $0x8] sm:$0xff]
  %v24 = vld [vmem:[%s1 + $0x10] sm:$0xff]
  %v25 = vld [vmem:[%s1 + $0x18] sm:$0xff]
  %v26 = vld [vmem:[%s2] sm:$0x1]
  %v28 = vlaneseq
  %v29 = vshrl.u32 %v28, 7
  %v30 = vsub.s32 0, %v29
  %v31 = vrot.slane %v26, %v30
  %vm33 = vcmask 261120
  %v35 = vsel %vm33, %v21, 0
  %37 = vmatprep.subr.mxu0 0.0
  %38 = vmatpush1.msra.mxu0 %v22
  %39 = vmatprep.subr.mxu0 0.0
  %40 = vmatpush1.msra.mxu0 %v23
  %41 = vmatprep.subr.mxu0 0.0
  %42 = vmatpush1.msra.mxu0 %v24
  %43 = vmatprep.subr.mxu0 0.0
  %44 = vmatpush1.msra.mxu0 %v25
  %45 = vmatprep.subr.mxu0 0.0
  %46 = vmatpush1.msra.mxu0 0.0
  %47 = vmatprep.subr.mxu0 0.0
  %48 = vmatpush1.msra.mxu0 0.0
  %49 = vmatprep.subr.mxu0 0.0
  %50 = vmatpush1.msra.mxu0 0.0
  %51 = vmatprep.subr.mxu0 0.0
  %52 = vmatpush1.msra.mxu0 0.0
  %53 = vmatprep.subr.mxu0 0.0
  %54 = vmatpush1.msra.mxu0 0.0
  %55 = vmatprep.subr.mxu0 0.0
  %56 = vmatpush1.msra.mxu0 0.0
  %57 = vmatprep.subr.mxu0 0.0
  %58 = vmatpush1.msra.mxu0 0.0
  %59 = vmatprep.subr.mxu0 0.0
  %60 = vmatpush1.msra.mxu0 0.0
  %61 = vmatprep.subr.mxu0 0.0
  %62 = vmatpush1.msra.mxu0 0.0
  %63 = vmatprep.subr.mxu0 0.0
  %64 = vmatpush1.msra.mxu0 0.0
  %65 = vmatprep.subr.mxu0 0.0
  %66 = vmatpush1.msra.mxu0 0.0
  %67 = vmatprep.subr.mxu0 0.0
  %68 = vmatpush1.msra.mxu0 0.0
  %69 = vmatprep.subr.mxu0 0.0
  %70 = vmatpush1.msra.mxu0 0.0
  %71 = vmatprep.subr.mxu0 0.0
  %72 = vmatpush1.msra.mxu0 0.0
  %73 = vmatprep.subr.mxu0 0.0
  %74 = vmatpush1.msra.mxu0 0.0
  %75 = vmatprep.subr.mxu0 0.0
  %76 = vmatpush1.msra.mxu0 0.0
  %77 = vmatprep.subr.mxu0 0.0
  %78 = vmatpush1.msra.mxu0 0.0
  %79 = vmatprep.subr.mxu0 0.0
  %80 = vmatpush1.msra.mxu0 0.0
  %81 = vmatprep.subr.mxu0 0.0
  %82 = vmatpush1.msra.mxu0 0.0
  %83 = vmatprep.subr.mxu0 0.0
  %84 = vmatpush1.msra.mxu0 0.0
  %85 = vmatprep.subr.mxu0 0.0
  %86 = vmatpush1.msra.mxu0 0.0
  %87 = vmatprep.subr.mxu0 0.0
  %88 = vmatpush1.msra.mxu0 0.0
  %89 = vmatprep.subr.mxu0 0.0
  %90 = vmatpush1.msra.mxu0 0.0
  %91 = vmatprep.subr.mxu0 0.0
  %92 = vmatpush1.msra.mxu0 0.0
  %93 = vmatprep.subr.mxu0 0.0
  %94 = vmatpush1.msra.mxu0 0.0
  %95 = vmatprep.subr.mxu0 0.0
  %96 = vmatpush1.msra.mxu0 0.0
  %97 = vmatprep.subr.mxu0 0.0
  %98 = vmatpush1.msra.mxu0 0.0
  %99 = vmatprep.subr.mxu0 0.0
  %100 = vmatpush1.msra.mxu0 0.0
  %101 = vmatprep.mubr.f32.mxu0 0.0
  %102 = vmatmul.mubr.f32.gmra.mrb[0].mxu0 %v35
  %v103 = vpop.f32.mrb[0].mxu0
  %v104 = vadd.f32 %v31, %v103
  %v105 = vpop.f32.mrb[0].mxu0
  %106 = vdwg.mxu0
  %v107 = vmax.f32 %v104, 0.0
  %v108 = vld [vmem:[%s3] sm:$0xff]
  %v109 = vld [vmem:[%s3 + $0x8] sm:$0xff]
  %v110 = vld [vmem:[%s3 + $0x10] sm:$0xff]
  %v111 = vld [vmem:[%s3 + $0x18] sm:$0xff]
  %v112 = vld [vmem:[%s3 + $0x20] sm:$0xff]
  %v113 = vld [vmem:[%s3 + $0x28] sm:$0xff]
  %v114 = vld [vmem:[%s3 + $0x30] sm:$0xff]
  %v115 = vld [vmem:[%s3 + $0x38] sm:$0xff]
  %v116 = vld [vmem:[%s3 + $0x40] sm:$0xff]
  %v117 = vld [vmem:[%s3 + $0x48] sm:$0xff]
  %v118 = vld [vmem:[%s3 + $0x50] sm:$0xff]
  %v119 = vld [vmem:[%s3 + $0x58] sm:$0xff]
  %v120 = vld [vmem:[%s3 + $0x60] sm:$0xff]
  %v121 = vld [vmem:[%s3 + $0x68] sm:$0xff]
  %v122 = vld [vmem:[%s3 + $0x70] sm:$0xff]
  %v123 = vld [vmem:[%s3 + $0x78] sm:$0xff]
  %s124 = sld [smem:[#allocation2]]
  %v125 = vstv %s124
  %126 = vmatprep.subr.mxu0 0.0
  %127 = vmatpush1.msra.mxu0 %v108
  %128 = vmatprep.subr.mxu0 0.0
  %129 = vmatpush1.msra.mxu0 %v109
  %130 = vmatprep.subr.mxu0 0.0
  %131 = vmatpush1.msra.mxu0 %v110
  %132 = vmatprep.subr.mxu0 0.0
  %133 = vmatpush1.msra.mxu0 %v111
  %134 = vmatprep.subr.mxu0 0.0
  %135 = vmatpush1.msra.mxu0 %v112
  %136 = vmatprep.subr.mxu0 0.0
  %137 = vmatpush1.msra.mxu0 %v113
  %138 = vmatprep.subr.mxu0 0.0
  %139 = vmatpush1.msra.mxu0 %v114
  %140 = vmatprep.subr.mxu0 0.0
  %141 = vmatpush1.msra.mxu0 %v115
  %142 = vmatprep.subr.mxu0 0.0
  %143 = vmatpush1.msra.mxu0 %v116
  %144 = vmatprep.subr.mxu0 0.0
  %145 = vmatpush1.msra.mxu0 %v117
  %146 = vmatprep.subr.mxu0 0.0
  %147 = vmatpush1.msra.mxu0 %v118
  %148 = vmatprep.subr.mxu0 0.0
  %149 = vmatpush1.msra.mxu0 %v119
  %150 = vmatprep.subr.mxu0 0.0
  %151 = vmatpush1.msra.mxu0 %v120
  %152 = vmatprep.subr.mxu0 0.0
  %153 = vmatpush1.msra.mxu0 %v121
  %154 = vmatprep.subr.mxu0 0.0
  %155 = vmatpush1.msra.mxu0 %v122
  %156 = vmatprep.subr.mxu0 0.0
  %157 = vmatpush1.msra.mxu0 %v123
  %158 = vmatprep.subr.mxu0 0.0
  %159 = vmatpush1.msra.mxu0 0.0
  %160 = vmatprep.subr.mxu0 0.0
  %161 = vmatpush1.msra.mxu0 0.0
  %162 = vmatprep.subr.mxu0 0.0
  %163 = vmatpush1.msra.mxu0 0.0
  %164 = vmatprep.subr.mxu0 0.0
  %165 = vmatpush1.msra.mxu0 0.0
  %166 = vmatprep.subr.mxu0 0.0
  %167 = vmatpush1.msra.mxu0 0.0
  %168 = vmatprep.subr.mxu0 0.0
  %169 = vmatpush1.msra.mxu0 0.0
  %170 = vmatprep.subr.mxu0 0.0
  %171 = vmatpush1.msra.mxu0 0.0
  %172 = vmatprep.subr.mxu0 0.0
  %173 = vmatpush1.msra.mxu0 0.0
  %174 = vmatprep.subr.mxu0 0.0
  %175 = vmatpush1.msra.mxu0 0.0
  %176 = vmatprep.subr.mxu0 0.0
  %177 = vmatpush1.msra.mxu0 0.0
  %178 = vmatprep.subr.mxu0 0.0
  %179 = vmatpush1.msra.mxu0 0.0
  %180 = vmatprep.subr.mxu0 0.0
  %181 = vmatpush1.msra.mxu0 0.0
  %182 = vmatprep.subr.mxu0 0.0
  %183 = vmatpush1.msra.mxu0 0.0
  %184 = vmatprep.subr.mxu0 0.0
  %185 = vmatpush1.msra.mxu0 0.0
  %186 = vmatprep.subr.mxu0 0.0
  %187 = vmatpush1.msra.mxu0 0.0
  %188 = vmatprep.subr.mxu0 0.0
  %189 = vmatpush1.msra.mxu0 0.0
  %190 = vmatprep.mubr.f32.mxu0 0.0
  %191 = vmatmul.mubr.f32.gmra.mrb[0].mxu0 %v107
  %v192 = vpop.f32.mrb[0].mxu0
  %v193 = vadd.f32 %v125, %v192
  %v194 = vpop.f32.mrb[0].mxu0
  %195 = vdwg.mxu0
  %v196 = vxor.u32 %v193, 2147483648
  %v197 = vmul.f32 %v196, 1.442695
  %v198 = vpow.pop %v197
  %v199 = vadd.f32 %v198, 1.0
  %v200 = vrcp.pop %v199
  %v201 = vmul.f32 1.0, %v200
  %vm202 = vcmask 7168
  %203 = vst.msk [vmem:[%s5] sm:$0xff] %vm202, %v201
  // Predicated region
  $region22: #{tpu_custom_call.1} parent=0 // pred_check
    _
  $region23: #{tpu_custom_call.1} parent=0 // pred_check_branch
    %205 = sbr.rel (0) target = $region25
  $region24: #{tpu_custom_call.1} parent=0 // pred_region
    _
  $region25: #{tpu_custom_call.1} parent=0 // pred_fallthru
    _
  // Predicated region
  $region26: #{tpu_custom_call.1} parent=0 // pred_check
    _
  $region27: #{tpu_custom_call.1} parent=0 // pred_check_branch
    %207 = sbr.rel (0) target = $region29
  $region28: #{tpu_custom_call.1} parent=0 // pred_region
    _
  $region29: #{tpu_custom_call.1} parent=0 // pred_fallthru
    _

</llo_original>
